<compile_context>
chip_gen: v5e
topology: v5e:2x2
jax: 0.10.0
libtpu: 0.0.40
codegen_flags: <defaults>
</compile_context>

<pallas_src>
import functools

import jax
import jax.numpy as jnp
from jax import lax
from jax.experimental import pallas as pl
from jax.experimental.pallas import tpu as pltpu

# LIF constants (match BatchedDynamicThresholdLIF defaults)
TAU_M = 20.0
V_REST = -65.0
THRESH0 = -50.0
TAU_THRESH = 100.0
BETA = 5.0
DT = 1.0

# Precomputed reciprocals: keep the serial inner loop pure VALU mul/add.
INV_TAU_M = 1.0 / TAU_M
DECAY_THRESH = DT / TAU_THRESH

MAX_CHUNK = 128   # max timesteps per grid step (chunk chosen to divide T)
MAX_UNROLL = 8    # partial unroll of the in-chunk time loop


def _pick_chunk(t, max_chunk=MAX_CHUNK):
    """Largest divisor of T that is <= max_chunk (so no per-step masking)."""
    c = min(t, max_chunk)
    while t % c != 0:
        c -= 1
    return c


def _num_batch_blocks(b):
    """Split batch across 2 blocks (-> 2 TCs on v7x) when tiles stay >= 8 rows."""
    if b % 2 == 0 and (b // 2) % 8 == 0:
        return 2
    return 1


def _snn_chunk_kernel(x_ref, w_in_ref, counts_ref, spikes_ref,
                      cur_ref, v_ref, th_ref, prev_ref, *, chunk, unroll):
    t_idx = pl.program_id(1)  # time-chunk index (innermost, "arbitrary")

    @pl.when(t_idx == 0)
    def _init():
        v_ref[...] = jnp.full_like(v_ref, V_REST)
        th_ref[...] = jnp.full_like(th_ref, THRESH0)
        prev_ref[...] = jnp.zeros_like(prev_ref)
        counts_ref[...] = jnp.zeros_like(counts_ref)

    # Fused input projection: one fat MXU matmul per chunk, result parked in
    # a VMEM scratch consumed by the serial LIF loop below.
    cb, bb, d = x_ref.shape
    n = w_in_ref.shape[1]
    x = x_ref[...].reshape(cb * bb, d)
    cur = jnp.dot(x, w_in_ref[...], preferred_element_type=jnp.float32)
    cur_ref[...] = cur.reshape(cb, bb, n)

    # Hoisted constant broadcast (JAX does not CSE broadcast_in_dim).
    v_reset = jnp.full((bb, n), V_REST, dtype=jnp.float32)

    def body(i, carry):
        v, th, prev, cnt = carry
        # Structured recurrent current for the module's fixed buffer
        #   W_rec = -0.5 * (ones - eye):
        #   prev @ W_rec == 0.5 * prev - 0.5 * sum(prev, axis=-1)
        row_sum = jnp.sum(prev, axis=-1, keepdims=True)      # XLU lane reduce
        net = cur_ref[i] + 0.5 * (prev - row_sum)

        # LIF membrane / dynamic-threshold update (reciprocal multiplies).
        v = v + (V_REST - v) * INV_TAU_M + net * DT
        spikes = (v >= th).astype(jnp.float32)
        th = th + BETA * spikes - (th - THRESH0) * DECAY_THRESH
        v = jnp.where(spikes > 0.0, v_reset, v)

        spikes_ref[i] = spikes
        return v, th, spikes, cnt + spikes

    carry0 = (v_ref[...], th_ref[...], prev_ref[...], counts_ref[...])
    v, th, prev, cnt = lax.fori_loop(0, chunk, body, carry0, unroll=unroll)

    v_ref[...] = v
    th_ref[...] = th
    prev_ref[...] = prev
    counts_ref[...] = cnt


@jax.jit
def snn_forward(input_spikes, w_in, w_rec, w_out):
    # NOTE: w_rec is accepted for API parity with the PyTorch module but the
    # kernel exploits its fixed structure -0.5*(ones - eye) (registered buffer).
    del w_rec
    T, B, D = input_spikes.shape
    N = w_in.shape[1]

    chunk = _pick_chunk(T)
    num_chunks = T // chunk
    nb = _num_batch_blocks(B)
    Bb = B // nb
    unroll = min(chunk, MAX_UNROLL)

    kernel = functools.partial(_snn_chunk_kernel, chunk=chunk, unroll=unroll)

    grid_spec = pltpu.PrefetchScalarGridSpec(
        num_scalar_prefetch=0,
        grid=(nb, num_chunks),
        in_specs=[
            pl.BlockSpec((chunk, Bb, D), lambda b, c: (c, b, 0)),  # input spikes chunk
            pl.BlockSpec((D, N), lambda b, c: (0, 0)),             # W_in (resident)
        ],
        out_specs=[
            pl.BlockSpec((Bb, N), lambda b, c: (b, 0)),            # spike counts (resident acc)
            pl.BlockSpec((chunk, Bb, N), lambda b, c: (c, b, 0)),  # spike record chunk
        ],
        scratch_shapes=[
            pltpu.VMEM((chunk, Bb, N), jnp.float32),  # per-chunk input currents
            pltpu.VMEM((Bb, N), jnp.float32),         # membrane potential
            pltpu.VMEM((Bb, N), jnp.float32),         # dynamic threshold
            pltpu.VMEM((Bb, N), jnp.float32),         # previous hidden spikes
        ],
    )

    counts, spike_record = pl.pallas_call(
        kernel,
        out_shape=(
            jax.ShapeDtypeStruct((B, N), jnp.float32),
            jax.ShapeDtypeStruct((T, B, N), jnp.float32),
        ),
        grid_spec=grid_spec,
        compiler_params=pltpu.CompilerParams(
            dimension_semantics=("parallel", "arbitrary")),  # batch || , time serial
    )(input_spikes, w_in)

    # Tiny lane-sparse readout (B,N)@(N,10) done in plain XLA.
    logits = jnp.dot(counts, w_out, preferred_element_type=jnp.float32)
    return logits, spike_record


def snn_reference(input_spikes, w_in, w_rec, w_out):
    """Pure-JAX reference matching the PyTorch forward (per-step matmuls)."""
    T, B, _ = input_spikes.shape
    N = w_in.shape[1]
    v = jnp.full((B, N), V_REST, jnp.float32)
    th = jnp.full((B, N), THRESH0, jnp.float32)
    prev = jnp.zeros((B, N), jnp.float32)

    def step(carry, x_t):
        v, th, prev = carry
        cur = jnp.dot(x_t, w_in, preferred_element_type=jnp.float32)
        net = cur + jnp.dot(prev, w_rec, preferred_element_type=jnp.float32)
        v = v + (V_REST - v) * INV_TAU_M + net * DT
        spikes = (v >= th).astype(jnp.float32)
        th = th + BETA * spikes - (th - THRESH0) * DECAY_THRESH
        v = jnp.where(spikes > 0.0, V_REST, v)
        return (v, th, spikes), spikes

    _, rec = lax.scan(step, (v, th, prev), input_spikes)
    counts = rec.sum(axis=0)
    logits = jnp.dot(counts, w_out, preferred_element_type=jnp.float32)
    return logits, rec


if __name__ == "__main__":
    # Small shapes consistent with the module's forward: (T, B, input_size)
    T, B, INPUT_SIZE, NUM_NEURONS, OUTPUT_SIZE = 8, 16, 128, 128, 10

    key = jax.random.PRNGKey(0)
    k1, k2, k3 = jax.random.split(key, 3)

    # Deterministic parameter init (torch.rand -> uniform [0,1)).  W_in is
    # quantized to multiples of 1/8 so the input projection is exact under any
    # matmul precision -> spike record comparison is deterministic.
    w_in = jnp.floor(
        jax.random.uniform(k1, (INPUT_SIZE, NUM_NEURONS), jnp.float32) * 8.0) / 8.0
    w_out = jax.random.uniform(k2, (NUM_NEURONS, OUTPUT_SIZE), jnp.float32)
    # W_rec = -0.5 * (ones - eye)  (registered buffer, fixed structure)
    w_rec = -0.5 * (jnp.ones((NUM_NEURONS, NUM_NEURONS), jnp.float32)
                    - jnp.eye(NUM_NEURONS, dtype=jnp.float32))

    # Binary input spikes
    input_spikes = (jax.random.uniform(k3, (T, B, INPUT_SIZE)) < 0.3).astype(jnp.float32)

    logits, spikes = snn_forward(input_spikes, w_in, w_rec, w_out)
    jax.block_until_ready((logits, spikes))

    ref_logits, ref_spikes = snn_reference(input_spikes, w_in, w_rec, w_out)
    assert jnp.allclose(spikes, ref_spikes), "spike record mismatch"
    assert jnp.allclose(logits, ref_logits, atol=1e-3, rtol=1e-4), "logits mismatch"

    print("KERNEL_OK")
</pallas_src>

<mosaic_0001>
module attributes {stable_mosaic.version = 11 : i64} {
  func.func @_snn_chunk_kernel(%arg0: i32, %arg1: i32, %arg2: memref<8x8x128xf32, #tpu.memory_space<vmem>>, %arg3: memref<128x128xf32, #tpu.memory_space<vmem>>, %arg4: memref<8x128xf32, #tpu.memory_space<vmem>>, %arg5: memref<8x8x128xf32, #tpu.memory_space<vmem>>, %arg6: memref<8x8x128xf32, #tpu.memory_space<vmem>>, %arg7: memref<8x128xf32, #tpu.memory_space<vmem>>, %arg8: memref<8x128xf32, #tpu.memory_space<vmem>>, %arg9: memref<8x128xf32, #tpu.memory_space<vmem>>) attributes {dimension_semantics = [#tpu.dimension_semantics<parallel>, #tpu.dimension_semantics<arbitrary>], iteration_bounds = array<i64: 2, 1>, scalar_prefetch = 0 : i64, scratch_operands = 4 : i64, tpu.core_type = #tpu.core_type<tc>, window_params = [{transform_indices = @transform_0, window_bounds = array<i64: 8, 8, 128>}, {pipeline_mode = #tpu.pipeline_mode<synchronous>, transform_indices = @transform_1, window_bounds = array<i64: 128, 128>}, {transform_indices = @transform_2, window_bounds = array<i64: 8, 128>}, {transform_indices = @transform_3, window_bounds = array<i64: 8, 8, 128>}]} {
    %c0_i32 = arith.constant 0 : i32
    %0 = arith.cmpi eq, %arg1, %c0_i32 : i32
    %1 = arith.extui %0 : i1 to i32
    %c0_i32_0 = arith.constant 0 : i32
    %2 = arith.cmpi ne, %1, %c0_i32_0 : i32
    scf.if %2 {
      %cst_130 = arith.constant -6.500000e+01 : f32
      %314 = vector.broadcast %cst_130 : f32 to vector<8x128xf32>
      %c0_131 = arith.constant 0 : index
      %c0_132 = arith.constant 0 : index
      %315 = vector.load %arg7[%c0_131, %c0_132] : memref<8x128xf32, #tpu.memory_space<vmem>>, vector<8x128xf32>
      tpu.vector_store %arg7[%c0_131, %c0_132], %314 {strides = array<i32>} : memref<8x128xf32, #tpu.memory_space<vmem>>, vector<8x128xf32>,
      %cst_133 = arith.constant -5.000000e+01 : f32
      %316 = vector.broadcast %cst_133 : f32 to vector<8x128xf32>
      %c0_134 = arith.constant 0 : index
      %c0_135 = arith.constant 0 : index
      %317 = vector.load %arg8[%c0_134, %c0_135] : memref<8x128xf32, #tpu.memory_space<vmem>>, vector<8x128xf32>
      tpu.vector_store %arg8[%c0_134, %c0_135], %316 {strides = array<i32>} : memref<8x128xf32, #tpu.memory_space<vmem>>, vector<8x128xf32>,
      %cst_136 = arith.constant 0.000000e+00 : f32
      %318 = vector.broadcast %cst_136 : f32 to vector<8x128xf32>
      %c0_137 = arith.constant 0 : index
      %c0_138 = arith.constant 0 : index
      %319 = vector.load %arg9[%c0_137, %c0_138] : memref<8x128xf32, #tpu.memory_space<vmem>>, vector<8x128xf32>
      tpu.vector_store %arg9[%c0_137, %c0_138], %318 {strides = array<i32>} : memref<8x128xf32, #tpu.memory_space<vmem>>, vector<8x128xf32>,
      %cst_139 = arith.constant 0.000000e+00 : f32
      %320 = vector.broadcast %cst_139 : f32 to vector<8x128xf32>
      %c0_140 = arith.constant 0 : index
      %c0_141 = arith.constant 0 : index
      %321 = vector.load %arg4[%c0_140, %c0_141] : memref<8x128xf32, #tpu.memory_space<vmem>>, vector<8x128xf32>
      tpu.vector_store %arg4[%c0_140, %c0_141], %320 {strides = array<i32>} : memref<8x128xf32, #tpu.memory_space<vmem>>, vector<8x128xf32>,
    } else {
    }
    %c0 = arith.constant 0 : index
    %c0_1 = arith.constant 0 : index
    %c0_2 = arith.constant 0 : index
    %3 = vector.load %arg2[%c0, %c0_1, %c0_2] : memref<8x8x128xf32, #tpu.memory_space<vmem>>, vector<8x8x128xf32>
    %4 = vector.shape_cast %3 : vector<8x8x128xf32> to vector<64x128xf32>
    %c0_3 = arith.constant 0 : index
    %c0_4 = arith.constant 0 : index
    %5 = vector.load %arg3[%c0_3, %c0_4] : memref<128x128xf32, #tpu.memory_space<vmem>>, vector<128x128xf32>
    %cst = arith.constant dense<0.000000e+00> : vector<64x128xf32>
    %6 = tpu.matmul %4, %5, %cst {dimension_numbers = #tpu.dot_dimension_numbers<[1], [0], [0], [1], [0, 0, 1, 1], [], []>} : vector<64x128xf32>, vector<128x128xf32>, vector<64x128xf32> -> vector<64x128xf32>
    %7 = vector.shape_cast %6 : vector<64x128xf32> to vector<8x8x128xf32>
    %c0_5 = arith.constant 0 : index
    %c0_6 = arith.constant 0 : index
    %c0_7 = arith.constant 0 : index
    %8 = vector.load %arg6[%c0_5, %c0_6, %c0_7] : memref<8x8x128xf32, #tpu.memory_space<vmem>>, vector<8x8x128xf32>
    tpu.vector_store %arg6[%c0_5, %c0_6, %c0_7], %7 {strides = array<i32>} : memref<8x8x128xf32, #tpu.memory_space<vmem>>, vector<8x8x128xf32>,
    %cst_8 = arith.constant -6.500000e+01 : f32
    %9 = vector.broadcast %cst_8 : f32 to vector<8x128xf32>
    %c0_9 = arith.constant 0 : index
    %c0_10 = arith.constant 0 : index
    %10 = vector.load %arg7[%c0_9, %c0_10] : memref<8x128xf32, #tpu.memory_space<vmem>>, vector<8x128xf32>
    %c0_11 = arith.constant 0 : index
    %c0_12 = arith.constant 0 : index
    %11 = vector.load %arg8[%c0_11, %c0_12] : memref<8x128xf32, #tpu.memory_space<vmem>>, vector<8x128xf32>
    %c0_13 = arith.constant 0 : index
    %c0_14 = arith.constant 0 : index
    %12 = vector.load %arg9[%c0_13, %c0_14] : memref<8x128xf32, #tpu.memory_space<vmem>>, vector<8x128xf32>
    %c0_15 = arith.constant 0 : index
    %c0_16 = arith.constant 0 : index
    %13 = vector.load %arg4[%c0_15, %c0_16] : memref<8x128xf32, #tpu.memory_space<vmem>>, vector<8x128xf32>
    %c0_i32_17 = arith.constant 0 : i32
    %cst_18 = arith.constant dense<0.000000e+00> : vector<8xf32>
    %14 = vector.multi_reduction <add>, %12, %cst_18 [1] : vector<8x128xf32> to vector<8xf32>
    %15 = vector.shape_cast %14 : vector<8xf32> to vector<8x1xf32>
    %16 = arith.index_cast %c0_i32_17 : i32 to index
    %c0_19 = arith.constant 0 : index
    %c0_20 = arith.constant 0 : index
    %17 = vector.load %arg6[%16, %c0_19, %c0_20] : memref<8x8x128xf32, #tpu.memory_space<vmem>>, vector<1x8x128xf32>
    %18 = vector.shape_cast %17 : vector<1x8x128xf32> to vector<8x128xf32>
    %19 = vector.broadcast %15 : vector<8x1xf32> to vector<8x128xf32>
    %20 = arith.subf %12, %19 : vector<8x128xf32>
    %cst_21 = arith.constant 5.000000e-01 : f32
    %21 = vector.broadcast %cst_21 : f32 to vector<8x128xf32>
    %22 = arith.mulf %21, %20 : vector<8x128xf32>
    %23 = arith.addf %18, %22 : vector<8x128xf32>
    %cst_22 = arith.constant -6.500000e+01 : f32
    %24 = vector.broadcast %cst_22 : f32 to vector<8x128xf32>
    %25 = arith.subf %24, %10 : vector<8x128xf32>
    %cst_23 = arith.constant 5.000000e-02 : f32
    %26 = vector.broadcast %cst_23 : f32 to vector<8x128xf32>
    %27 = arith.mulf %25, %26 : vector<8x128xf32>
    %28 = arith.addf %10, %27 : vector<8x128xf32>
    %cst_24 = arith.constant 1.000000e+00 : f32
    %29 = vector.broadcast %cst_24 : f32 to vector<8x128xf32>
    %30 = arith.mulf %23, %29 : vector<8x128xf32>
    %31 = arith.addf %28, %30 : vector<8x128xf32>
    %32 = arith.cmpf oge, %31, %11 : vector<8x128xf32>
    %33 = arith.extui %32 : vector<8x128xi1> to vector<8x128xi32>
    %34 = arith.sitofp %33 : vector<8x128xi32> to vector<8x128xf32>
    %cst_25 = arith.constant 5.000000e+00 : f32
    %35 = vector.broadcast %cst_25 : f32 to vector<8x128xf32>
    %36 = arith.mulf %35, %34 : vector<8x128xf32>
    %37 = arith.addf %11, %36 : vector<8x128xf32>
    %cst_26 = arith.constant -5.000000e+01 : f32
    %38 = vector.broadcast %cst_26 : f32 to vector<8x128xf32>
    %39 = arith.subf %11, %38 : vector<8x128xf32>
    %cst_27 = arith.constant 0.00999999977 : f32
    %40 = vector.broadcast %cst_27 : f32 to vector<8x128xf32>
    %41 = arith.mulf %39, %40 : vector<8x128xf32>
    %42 = arith.subf %37, %41 : vector<8x128xf32>
    %cst_28 = arith.constant 0.000000e+00 : f32
    %43 = vector.broadcast %cst_28 : f32 to vector<8x128xf32>
    %44 = arith.cmpf ogt, %34, %43 : vector<8x128xf32>
    %45 = arith.select %44, %9, %31 : vector<8x128xi1>, vector<8x128xf32>
    %46 = arith.index_cast %c0_i32_17 : i32 to index
    %c0_29 = arith.constant 0 : index
    %c0_30 = arith.constant 0 : index
    %47 = vector.load %arg5[%46, %c0_29, %c0_30] : memref<8x8x128xf32, #tpu.memory_space<vmem>>, vector<1x8x128xf32>
    %48 = vector.shape_cast %47 : vector<1x8x128xf32> to vector<8x128xf32>
    %49 = vector.shape_cast %34 : vector<8x128xf32> to vector<1x8x128xf32>
    tpu.vector_store %arg5[%46, %c0_29, %c0_30], %49 {strides = array<i32>} : memref<8x8x128xf32, #tpu.memory_space<vmem>>, vector<1x8x128xf32>,
    %50 = arith.addf %13, %34 : vector<8x128xf32>
    %c1_i32 = arith.constant 1 : i32
    %cst_31 = arith.constant dense<0.000000e+00> : vector<8xf32>
    %51 = vector.multi_reduction <add>, %34, %cst_31 [1] : vector<8x128xf32> to vector<8xf32>
    %52 = vector.shape_cast %51 : vector<8xf32> to vector<8x1xf32>
    %53 = arith.index_cast %c1_i32 : i32 to index
    %c0_32 = arith.constant 0 : index
    %c0_33 = arith.constant 0 : index
    %54 = vector.load %arg6[%53, %c0_32, %c0_33] : memref<8x8x128xf32, #tpu.memory_space<vmem>>, vector<1x8x128xf32>
    %55 = vector.shape_cast %54 : vector<1x8x128xf32> to vector<8x128xf32>
    %56 = vector.broadcast %52 : vector<8x1xf32> to vector<8x128xf32>
    %57 = arith.subf %34, %56 : vector<8x128xf32>
    %cst_34 = arith.constant 5.000000e-01 : f32
    %58 = vector.broadcast %cst_34 : f32 to vector<8x128xf32>
    %59 = arith.mulf %58, %57 : vector<8x128xf32>
    %60 = arith.addf %55, %59 : vector<8x128xf32>
    %cst_35 = arith.constant -6.500000e+01 : f32
    %61 = vector.broadcast %cst_35 : f32 to vector<8x128xf32>
    %62 = arith.subf %61, %45 : vector<8x128xf32>
    %cst_36 = arith.constant 5.000000e-02 : f32
    %63 = vector.broadcast %cst_36 : f32 to vector<8x128xf32>
    %64 = arith.mulf %62, %63 : vector<8x128xf32>
    %65 = arith.addf %45, %64 : vector<8x128xf32>
    %cst_37 = arith.constant 1.000000e+00 : f32
    %66 = vector.broadcast %cst_37 : f32 to vector<8x128xf32>
    %67 = arith.mulf %60, %66 : vector<8x128xf32>
    %68 = arith.addf %65, %67 : vector<8x128xf32>
    %69 = arith.cmpf oge, %68, %42 : vector<8x128xf32>
    %70 = arith.extui %69 : vector<8x128xi1> to vector<8x128xi32>
    %71 = arith.sitofp %70 : vector<8x128xi32> to vector<8x128xf32>
    %cst_38 = arith.constant 5.000000e+00 : f32
    %72 = vector.broadcast %cst_38 : f32 to vector<8x128xf32>
    %73 = arith.mulf %72, %71 : vector<8x128xf32>
    %74 = arith.addf %42, %73 : vector<8x128xf32>
    %cst_39 = arith.constant -5.000000e+01 : f32
    %75 = vector.broadcast %cst_39 : f32 to vector<8x128xf32>
    %76 = arith.subf %42, %75 : vector<8x128xf32>
    %cst_40 = arith.constant 0.00999999977 : f32
    %77 = vector.broadcast %cst_40 : f32 to vector<8x128xf32>
    %78 = arith.mulf %76, %77 : vector<8x128xf32>
    %79 = arith.subf %74, %78 : vector<8x128xf32>
    %cst_41 = arith.constant 0.000000e+00 : f32
    %80 = vector.broadcast %cst_41 : f32 to vector<8x128xf32>
    %81 = arith.cmpf ogt, %71, %80 : vector<8x128xf32>
    %82 = arith.select %81, %9, %68 : vector<8x128xi1>, vector<8x128xf32>
    %83 = arith.index_cast %c1_i32 : i32 to index
    %c0_42 = arith.constant 0 : index
    %c0_43 = arith.constant 0 : index
    %84 = vector.load %arg5[%83, %c0_42, %c0_43] : memref<8x8x128xf32, #tpu.memory_space<vmem>>, vector<1x8x128xf32>
    %85 = vector.shape_cast %84 : vector<1x8x128xf32> to vector<8x128xf32>
    %86 = vector.shape_cast %71 : vector<8x128xf32> to vector<1x8x128xf32>
    tpu.vector_store %arg5[%83, %c0_42, %c0_43], %86 {strides = array<i32>} : memref<8x8x128xf32, #tpu.memory_space<vmem>>, vector<1x8x128xf32>,
    %87 = arith.addf %50, %71 : vector<8x128xf32>
    %c2_i32 = arith.constant 2 : i32
    %cst_44 = arith.constant dense<0.000000e+00> : vector<8xf32>
    %88 = vector.multi_reduction <add>, %71, %cst_44 [1] : vector<8x128xf32> to vector<8xf32>
    %89 = vector.shape_cast %88 : vector<8xf32> to vector<8x1xf32>
    %90 = arith.index_cast %c2_i32 : i32 to index
    %c0_45 = arith.constant 0 : index
    %c0_46 = arith.constant 0 : index
    %91 = vector.load %arg6[%90, %c0_45, %c0_46] : memref<8x8x128xf32, #tpu.memory_space<vmem>>, vector<1x8x128xf32>
    %92 = vector.shape_cast %91 : vector<1x8x128xf32> to vector<8x128xf32>
    %93 = vector.broadcast %89 : vector<8x1xf32> to vector<8x128xf32>
    %94 = arith.subf %71, %93 : vector<8x128xf32>
    %cst_47 = arith.constant 5.000000e-01 : f32
    %95 = vector.broadcast %cst_47 : f32 to vector<8x128xf32>
    %96 = arith.mulf %95, %94 : vector<8x128xf32>
    %97 = arith.addf %92, %96 : vector<8x128xf32>
    %cst_48 = arith.constant -6.500000e+01 : f32
    %98 = vector.broadcast %cst_48 : f32 to vector<8x128xf32>
    %99 = arith.subf %98, %82 : vector<8x128xf32>
    %cst_49 = arith.constant 5.000000e-02 : f32
    %100 = vector.broadcast %cst_49 : f32 to vector<8x128xf32>
    %101 = arith.mulf %99, %100 : vector<8x128xf32>
    %102 = arith.addf %82, %101 : vector<8x128xf32>
    %cst_50 = arith.constant 1.000000e+00 : f32
    %103 = vector.broadcast %cst_50 : f32 to vector<8x128xf32>
    %104 = arith.mulf %97, %103 : vector<8x128xf32>
    %105 = arith.addf %102, %104 : vector<8x128xf32>
    %106 = arith.cmpf oge, %105, %79 : vector<8x128xf32>
    %107 = arith.extui %106 : vector<8x128xi1> to vector<8x128xi32>
    %108 = arith.sitofp %107 : vector<8x128xi32> to vector<8x128xf32>
    %cst_51 = arith.constant 5.000000e+00 : f32
    %109 = vector.broadcast %cst_51 : f32 to vector<8x128xf32>
    %110 = arith.mulf %109, %108 : vector<8x128xf32>
    %111 = arith.addf %79, %110 : vector<8x128xf32>
    %cst_52 = arith.constant -5.000000e+01 : f32
    %112 = vector.broadcast %cst_52 : f32 to vector<8x128xf32>
    %113 = arith.subf %79, %112 : vector<8x128xf32>
    %cst_53 = arith.constant 0.00999999977 : f32
    %114 = vector.broadcast %cst_53 : f32 to vector<8x128xf32>
    %115 = arith.mulf %113, %114 : vector<8x128xf32>
    %116 = arith.subf %111, %115 : vector<8x128xf32>
    %cst_54 = arith.constant 0.000000e+00 : f32
    %117 = vector.broadcast %cst_54 : f32 to vector<8x128xf32>
    %118 = arith.cmpf ogt, %108, %117 : vector<8x128xf32>
    %119 = arith.select %118, %9, %105 : vector<8x128xi1>, vector<8x128xf32>
    %120 = arith.index_cast %c2_i32 : i32 to index
    %c0_55 = arith.constant 0 : index
    %c0_56 = arith.constant 0 : index
    %121 = vector.load %arg5[%120, %c0_55, %c0_56] : memref<8x8x128xf32, #tpu.memory_space<vmem>>, vector<1x8x128xf32>
    %122 = vector.shape_cast %121 : vector<1x8x128xf32> to vector<8x128xf32>
    %123 = vector.shape_cast %108 : vector<8x128xf32> to vector<1x8x128xf32>
    tpu.vector_store %arg5[%120, %c0_55, %c0_56], %123 {strides = array<i32>} : memref<8x8x128xf32, #tpu.memory_space<vmem>>, vector<1x8x128xf32>,
    %124 = arith.addf %87, %108 : vector<8x128xf32>
    %c3_i32 = arith.constant 3 : i32
    %cst_57 = arith.constant dense<0.000000e+00> : vector<8xf32>
    %125 = vector.multi_reduction <add>, %108, %cst_57 [1] : vector<8x128xf32> to vector<8xf32>
    %126 = vector.shape_cast %125 : vector<8xf32> to vector<8x1xf32>
    %127 = arith.index_cast %c3_i32 : i32 to index
    %c0_58 = arith.constant 0 : index
    %c0_59 = arith.constant 0 : index
    %128 = vector.load %arg6[%127, %c0_58, %c0_59] : memref<8x8x128xf32, #tpu.memory_space<vmem>>, vector<1x8x128xf32>
    %129 = vector.shape_cast %128 : vector<1x8x128xf32> to vector<8x128xf32>
    %130 = vector.broadcast %126 : vector<8x1xf32> to vector<8x128xf32>
    %131 = arith.subf %108, %130 : vector<8x128xf32>
    %cst_60 = arith.constant 5.000000e-01 : f32
    %132 = vector.broadcast %cst_60 : f32 to vector<8x128xf32>
    %133 = arith.mulf %132, %131 : vector<8x128xf32>
    %134 = arith.addf %129, %133 : vector<8x128xf32>
    %cst_61 = arith.constant -6.500000e+01 : f32
    %135 = vector.broadcast %cst_61 : f32 to vector<8x128xf32>
    %136 = arith.subf %135, %119 : vector<8x128xf32>
    %cst_62 = arith.constant 5.000000e-02 : f32
    %137 = vector.broadcast %cst_62 : f32 to vector<8x128xf32>
    %138 = arith.mulf %136, %137 : vector<8x128xf32>
    %139 = arith.addf %119, %138 : vector<8x128xf32>
    %cst_63 = arith.constant 1.000000e+00 : f32
    %140 = vector.broadcast %cst_63 : f32 to vector<8x128xf32>
    %141 = arith.mulf %134, %140 : vector<8x128xf32>
    %142 = arith.addf %139, %141 : vector<8x128xf32>
    %143 = arith.cmpf oge, %142, %116 : vector<8x128xf32>
    %144 = arith.extui %143 : vector<8x128xi1> to vector<8x128xi32>
    %145 = arith.sitofp %144 : vector<8x128xi32> to vector<8x128xf32>
    %cst_64 = arith.constant 5.000000e+00 : f32
    %146 = vector.broadcast %cst_64 : f32 to vector<8x128xf32>
    %147 = arith.mulf %146, %145 : vector<8x128xf32>
    %148 = arith.addf %116, %147 : vector<8x128xf32>
    %cst_65 = arith.constant -5.000000e+01 : f32
    %149 = vector.broadcast %cst_65 : f32 to vector<8x128xf32>
    %150 = arith.subf %116, %149 : vector<8x128xf32>
    %cst_66 = arith.constant 0.00999999977 : f32
    %151 = vector.broadcast %cst_66 : f32 to vector<8x128xf32>
    %152 = arith.mulf %150, %151 : vector<8x128xf32>
    %153 = arith.subf %148, %152 : vector<8x128xf32>
    %cst_67 = arith.constant 0.000000e+00 : f32
    %154 = vector.broadcast %cst_67 : f32 to vector<8x128xf32>
    %155 = arith.cmpf ogt, %145, %154 : vector<8x128xf32>
    %156 = arith.select %155, %9, %142 : vector<8x128xi1>, vector<8x128xf32>
    %157 = arith.index_cast %c3_i32 : i32 to index
    %c0_68 = arith.constant 0 : index
    %c0_69 = arith.constant 0 : index
    %158 = vector.load %arg5[%157, %c0_68, %c0_69] : memref<8x8x128xf32, #tpu.memory_space<vmem>>, vector<1x8x128xf32>
    %159 = vector.shape_cast %158 : vector<1x8x128xf32> to vector<8x128xf32>
    %160 = vector.shape_cast %145 : vector<8x128xf32> to vector<1x8x128xf32>
    tpu.vector_store %arg5[%157, %c0_68, %c0_69], %160 {strides = array<i32>} : memref<8x8x128xf32, #tpu.memory_space<vmem>>, vector<1x8x128xf32>,
    %161 = arith.addf %124, %145 : vector<8x128xf32>
    %c4_i32 = arith.constant 4 : i32
    %cst_70 = arith.constant dense<0.000000e+00> : vector<8xf32>
    %162 = vector.multi_reduction <add>, %145, %cst_70 [1] : vector<8x128xf32> to vector<8xf32>
    %163 = vector.shape_cast %162 : vector<8xf32> to vector<8x1xf32>
    %164 = arith.index_cast %c4_i32 : i32 to index
    %c0_71 = arith.constant 0 : index
    %c0_72 = arith.constant 0 : index
    %165 = vector.load %arg6[%164, %c0_71, %c0_72] : memref<8x8x128xf32, #tpu.memory_space<vmem>>, vector<1x8x128xf32>
    %166 = vector.shape_cast %165 : vector<1x8x128xf32> to vector<8x128xf32>
    %167 = vector.broadcast %163 : vector<8x1xf32> to vector<8x128xf32>
    %168 = arith.subf %145, %167 : vector<8x128xf32>
    %cst_73 = arith.constant 5.000000e-01 : f32
    %169 = vector.broadcast %cst_73 : f32 to vector<8x128xf32>
    %170 = arith.mulf %169, %168 : vector<8x128xf32>
    %171 = arith.addf %166, %170 : vector<8x128xf32>
    %cst_74 = arith.constant -6.500000e+01 : f32
    %172 = vector.broadcast %cst_74 : f32 to vector<8x128xf32>
    %173 = arith.subf %172, %156 : vector<8x128xf32>
    %cst_75 = arith.constant 5.000000e-02 : f32
    %174 = vector.broadcast %cst_75 : f32 to vector<8x128xf32>
    %175 = arith.mulf %173, %174 : vector<8x128xf32>
    %176 = arith.addf %156, %175 : vector<8x128xf32>
    %cst_76 = arith.constant 1.000000e+00 : f32
    %177 = vector.broadcast %cst_76 : f32 to vector<8x128xf32>
    %178 = arith.mulf %171, %177 : vector<8x128xf32>
    %179 = arith.addf %176, %178 : vector<8x128xf32>
    %180 = arith.cmpf oge, %179, %153 : vector<8x128xf32>
    %181 = arith.extui %180 : vector<8x128xi1> to vector<8x128xi32>
    %182 = arith.sitofp %181 : vector<8x128xi32> to vector<8x128xf32>
    %cst_77 = arith.constant 5.000000e+00 : f32
    %183 = vector.broadcast %cst_77 : f32 to vector<8x128xf32>
    %184 = arith.mulf %183, %182 : vector<8x128xf32>
    %185 = arith.addf %153, %184 : vector<8x128xf32>
    %cst_78 = arith.constant -5.000000e+01 : f32
    %186 = vector.broadcast %cst_78 : f32 to vector<8x128xf32>
    %187 = arith.subf %153, %186 : vector<8x128xf32>
    %cst_79 = arith.constant 0.00999999977 : f32
    %188 = vector.broadcast %cst_79 : f32 to vector<8x128xf32>
    %189 = arith.mulf %187, %188 : vector<8x128xf32>
    %190 = arith.subf %185, %189 : vector<8x128xf32>
    %cst_80 = arith.constant 0.000000e+00 : f32
    %191 = vector.broadcast %cst_80 : f32 to vector<8x128xf32>
    %192 = arith.cmpf ogt, %182, %191 : vector<8x128xf32>
    %193 = arith.select %192, %9, %179 : vector<8x128xi1>, vector<8x128xf32>
    %194 = arith.index_cast %c4_i32 : i32 to index
    %c0_81 = arith.constant 0 : index
    %c0_82 = arith.constant 0 : index
    %195 = vector.load %arg5[%194, %c0_81, %c0_82] : memref<8x8x128xf32, #tpu.memory_space<vmem>>, vector<1x8x128xf32>
    %196 = vector.shape_cast %195 : vector<1x8x128xf32> to vector<8x128xf32>
    %197 = vector.shape_cast %182 : vector<8x128xf32> to vector<1x8x128xf32>
    tpu.vector_store %arg5[%194, %c0_81, %c0_82], %197 {strides = array<i32>} : memref<8x8x128xf32, #tpu.memory_space<vmem>>, vector<1x8x128xf32>,
    %198 = arith.addf %161, %182 : vector<8x128xf32>
    %c5_i32 = arith.constant 5 : i32
    %cst_83 = arith.constant dense<0.000000e+00> : vector<8xf32>
    %199 = vector.multi_reduction <add>, %182, %cst_83 [1] : vector<8x128xf32> to vector<8xf32>
    %200 = vector.shape_cast %199 : vector<8xf32> to vector<8x1xf32>
    %201 = arith.index_cast %c5_i32 : i32 to index
    %c0_84 = arith.constant 0 : index
    %c0_85 = arith.constant 0 : index
    %202 = vector.load %arg6[%201, %c0_84, %c0_85] : memref<8x8x128xf32, #tpu.memory_space<vmem>>, vector<1x8x128xf32>
    %203 = vector.shape_cast %202 : vector<1x8x128xf32> to vector<8x128xf32>
    %204 = vector.broadcast %200 : vector<8x1xf32> to vector<8x128xf32>
    %205 = arith.subf %182, %204 : vector<8x128xf32>
    %cst_86 = arith.constant 5.000000e-01 : f32
    %206 = vector.broadcast %cst_86 : f32 to vector<8x128xf32>
    %207 = arith.mulf %206, %205 : vector<8x128xf32>
    %208 = arith.addf %203, %207 : vector<8x128xf32>
    %cst_87 = arith.constant -6.500000e+01 : f32
    %209 = vector.broadcast %cst_87 : f32 to vector<8x128xf32>
    %210 = arith.subf %209, %193 : vector<8x128xf32>
    %cst_88 = arith.constant 5.000000e-02 : f32
    %211 = vector.broadcast %cst_88 : f32 to vector<8x128xf32>
    %212 = arith.mulf %210, %211 : vector<8x128xf32>
    %213 = arith.addf %193, %212 : vector<8x128xf32>
    %cst_89 = arith.constant 1.000000e+00 : f32
    %214 = vector.broadcast %cst_89 : f32 to vector<8x128xf32>
    %215 = arith.mulf %208, %214 : vector<8x128xf32>
    %216 = arith.addf %213, %215 : vector<8x128xf32>
    %217 = arith.cmpf oge, %216, %190 : vector<8x128xf32>
    %218 = arith.extui %217 : vector<8x128xi1> to vector<8x128xi32>
    %219 = arith.sitofp %218 : vector<8x128xi32> to vector<8x128xf32>
    %cst_90 = arith.constant 5.000000e+00 : f32
    %220 = vector.broadcast %cst_90 : f32 to vector<8x128xf32>
    %221 = arith.mulf %220, %219 : vector<8x128xf32>
    %222 = arith.addf %190, %221 : vector<8x128xf32>
    %cst_91 = arith.constant -5.000000e+01 : f32
    %223 = vector.broadcast %cst_91 : f32 to vector<8x128xf32>
    %224 = arith.subf %190, %223 : vector<8x128xf32>
    %cst_92 = arith.constant 0.00999999977 : f32
    %225 = vector.broadcast %cst_92 : f32 to vector<8x128xf32>
    %226 = arith.mulf %224, %225 : vector<8x128xf32>
    %227 = arith.subf %222, %226 : vector<8x128xf32>
    %cst_93 = arith.constant 0.000000e+00 : f32
    %228 = vector.broadcast %cst_93 : f32 to vector<8x128xf32>
    %229 = arith.cmpf ogt, %219, %228 : vector<8x128xf32>
    %230 = arith.select %229, %9, %216 : vector<8x128xi1>, vector<8x128xf32>
    %231 = arith.index_cast %c5_i32 : i32 to index
    %c0_94 = arith.constant 0 : index
    %c0_95 = arith.constant 0 : index
    %232 = vector.load %arg5[%231, %c0_94, %c0_95] : memref<8x8x128xf32, #tpu.memory_space<vmem>>, vector<1x8x128xf32>
    %233 = vector.shape_cast %232 : vector<1x8x128xf32> to vector<8x128xf32>
    %234 = vector.shape_cast %219 : vector<8x128xf32> to vector<1x8x128xf32>
    tpu.vector_store %arg5[%231, %c0_94, %c0_95], %234 {strides = array<i32>} : memref<8x8x128xf32, #tpu.memory_space<vmem>>, vector<1x8x128xf32>,
    %235 = arith.addf %198, %219 : vector<8x128xf32>
    %c6_i32 = arith.constant 6 : i32
    %cst_96 = arith.constant dense<0.000000e+00> : vector<8xf32>
    %236 = vector.multi_reduction <add>, %219, %cst_96 [1] : vector<8x128xf32> to vector<8xf32>
    %237 = vector.shape_cast %236 : vector<8xf32> to vector<8x1xf32>
    %238 = arith.index_cast %c6_i32 : i32 to index
    %c0_97 = arith.constant 0 : index
    %c0_98 = arith.constant 0 : index
    %239 = vector.load %arg6[%238, %c0_97, %c0_98] : memref<8x8x128xf32, #tpu.memory_space<vmem>>, vector<1x8x128xf32>
    %240 = vector.shape_cast %239 : vector<1x8x128xf32> to vector<8x128xf32>
    %241 = vector.broadcast %237 : vector<8x1xf32> to vector<8x128xf32>
    %242 = arith.subf %219, %241 : vector<8x128xf32>
    %cst_99 = arith.constant 5.000000e-01 : f32
    %243 = vector.broadcast %cst_99 : f32 to vector<8x128xf32>
    %244 = arith.mulf %243, %242 : vector<8x128xf32>
    %245 = arith.addf %240, %244 : vector<8x128xf32>
    %cst_100 = arith.constant -6.500000e+01 : f32
    %246 = vector.broadcast %cst_100 : f32 to vector<8x128xf32>
    %247 = arith.subf %246, %230 : vector<8x128xf32>
    %cst_101 = arith.constant 5.000000e-02 : f32
    %248 = vector.broadcast %cst_101 : f32 to vector<8x128xf32>
    %249 = arith.mulf %247, %248 : vector<8x128xf32>
    %250 = arith.addf %230, %249 : vector<8x128xf32>
    %cst_102 = arith.constant 1.000000e+00 : f32
    %251 = vector.broadcast %cst_102 : f32 to vector<8x128xf32>
    %252 = arith.mulf %245, %251 : vector<8x128xf32>
    %253 = arith.addf %250, %252 : vector<8x128xf32>
    %254 = arith.cmpf oge, %253, %227 : vector<8x128xf32>
    %255 = arith.extui %254 : vector<8x128xi1> to vector<8x128xi32>
    %256 = arith.sitofp %255 : vector<8x128xi32> to vector<8x128xf32>
    %cst_103 = arith.constant 5.000000e+00 : f32
    %257 = vector.broadcast %cst_103 : f32 to vector<8x128xf32>
    %258 = arith.mulf %257, %256 : vector<8x128xf32>
    %259 = arith.addf %227, %258 : vector<8x128xf32>
    %cst_104 = arith.constant -5.000000e+01 : f32
    %260 = vector.broadcast %cst_104 : f32 to vector<8x128xf32>
    %261 = arith.subf %227, %260 : vector<8x128xf32>
    %cst_105 = arith.constant 0.00999999977 : f32
    %262 = vector.broadcast %cst_105 : f32 to vector<8x128xf32>
    %263 = arith.mulf %261, %262 : vector<8x128xf32>
    %264 = arith.subf %259, %263 : vector<8x128xf32>
    %cst_106 = arith.constant 0.000000e+00 : f32
    %265 = vector.broadcast %cst_106 : f32 to vector<8x128xf32>
    %266 = arith.cmpf ogt, %256, %265 : vector<8x128xf32>
    %267 = arith.select %266, %9, %253 : vector<8x128xi1>, vector<8x128xf32>
    %268 = arith.index_cast %c6_i32 : i32 to index
    %c0_107 = arith.constant 0 : index
    %c0_108 = arith.constant 0 : index
    %269 = vector.load %arg5[%268, %c0_107, %c0_108] : memref<8x8x128xf32, #tpu.memory_space<vmem>>, vector<1x8x128xf32>
    %270 = vector.shape_cast %269 : vector<1x8x128xf32> to vector<8x128xf32>
    %271 = vector.shape_cast %256 : vector<8x128xf32> to vector<1x8x128xf32>
    tpu.vector_store %arg5[%268, %c0_107, %c0_108], %271 {strides = array<i32>} : memref<8x8x128xf32, #tpu.memory_space<vmem>>, vector<1x8x128xf32>,
    %272 = arith.addf %235, %256 : vector<8x128xf32>
    %c7_i32 = arith.constant 7 : i32
    %cst_109 = arith.constant dense<0.000000e+00> : vector<8xf32>
    %273 = vector.multi_reduction <add>, %256, %cst_109 [1] : vector<8x128xf32> to vector<8xf32>
    %274 = vector.shape_cast %273 : vector<8xf32> to vector<8x1xf32>
    %275 = arith.index_cast %c7_i32 : i32 to index
    %c0_110 = arith.constant 0 : index
    %c0_111 = arith.constant 0 : index
    %276 = vector.load %arg6[%275, %c0_110, %c0_111] : memref<8x8x128xf32, #tpu.memory_space<vmem>>, vector<1x8x128xf32>
    %277 = vector.shape_cast %276 : vector<1x8x128xf32> to vector<8x128xf32>
    %278 = vector.broadcast %274 : vector<8x1xf32> to vector<8x128xf32>
    %279 = arith.subf %256, %278 : vector<8x128xf32>
    %cst_112 = arith.constant 5.000000e-01 : f32
    %280 = vector.broadcast %cst_112 : f32 to vector<8x128xf32>
    %281 = arith.mulf %280, %279 : vector<8x128xf32>
    %282 = arith.addf %277, %281 : vector<8x128xf32>
    %cst_113 = arith.constant -6.500000e+01 : f32
    %283 = vector.broadcast %cst_113 : f32 to vector<8x128xf32>
    %284 = arith.subf %283, %267 : vector<8x128xf32>
    %cst_114 = arith.constant 5.000000e-02 : f32
    %285 = vector.broadcast %cst_114 : f32 to vector<8x128xf32>
    %286 = arith.mulf %284, %285 : vector<8x128xf32>
    %287 = arith.addf %267, %286 : vector<8x128xf32>
    %cst_115 = arith.constant 1.000000e+00 : f32
    %288 = vector.broadcast %cst_115 : f32 to vector<8x128xf32>
    %289 = arith.mulf %282, %288 : vector<8x128xf32>
    %290 = arith.addf %287, %289 : vector<8x128xf32>
    %291 = arith.cmpf oge, %290, %264 : vector<8x128xf32>
    %292 = arith.extui %291 : vector<8x128xi1> to vector<8x128xi32>
    %293 = arith.sitofp %292 : vector<8x128xi32> to vector<8x128xf32>
    %cst_116 = arith.constant 5.000000e+00 : f32
    %294 = vector.broadcast %cst_116 : f32 to vector<8x128xf32>
    %295 = arith.mulf %294, %293 : vector<8x128xf32>
    %296 = arith.addf %264, %295 : vector<8x128xf32>
    %cst_117 = arith.constant -5.000000e+01 : f32
    %297 = vector.broadcast %cst_117 : f32 to vector<8x128xf32>
    %298 = arith.subf %264, %297 : vector<8x128xf32>
    %cst_118 = arith.constant 0.00999999977 : f32
    %299 = vector.broadcast %cst_118 : f32 to vector<8x128xf32>
    %300 = arith.mulf %298, %299 : vector<8x128xf32>
    %301 = arith.subf %296, %300 : vector<8x128xf32>
    %cst_119 = arith.constant 0.000000e+00 : f32
    %302 = vector.broadcast %cst_119 : f32 to vector<8x128xf32>
    %303 = arith.cmpf ogt, %293, %302 : vector<8x128xf32>
    %304 = arith.select %303, %9, %290 : vector<8x128xi1>, vector<8x128xf32>
    %305 = arith.index_cast %c7_i32 : i32 to index
    %c0_120 = arith.constant 0 : index
    %c0_121 = arith.constant 0 : index
    %306 = vector.load %arg5[%305, %c0_120, %c0_121] : memref<8x8x128xf32, #tpu.memory_space<vmem>>, vector<1x8x128xf32>
    %307 = vector.shape_cast %306 : vector<1x8x128xf32> to vector<8x128xf32>
    %308 = vector.shape_cast %293 : vector<8x128xf32> to vector<1x8x128xf32>
    tpu.vector_store %arg5[%305, %c0_120, %c0_121], %308 {strides = array<i32>} : memref<8x8x128xf32, #tpu.memory_space<vmem>>, vector<1x8x128xf32>,
    %309 = arith.addf %272, %293 : vector<8x128xf32>
    %c8_i32 = arith.constant 8 : i32
    %c0_122 = arith.constant 0 : index
    %c0_123 = arith.constant 0 : index
    %310 = vector.load %arg7[%c0_122, %c0_123] : memref<8x128xf32, #tpu.memory_space<vmem>>, vector<8x128xf32>
    tpu.vector_store %arg7[%c0_122, %c0_123], %304 {strides = array<i32>} : memref<8x128xf32, #tpu.memory_space<vmem>>, vector<8x128xf32>,
    %c0_124 = arith.constant 0 : index
    %c0_125 = arith.constant 0 : index
    %311 = vector.load %arg8[%c0_124, %c0_125] : memref<8x128xf32, #tpu.memory_space<vmem>>, vector<8x128xf32>
    tpu.vector_store %arg8[%c0_124, %c0_125], %301 {strides = array<i32>} : memref<8x128xf32, #tpu.memory_space<vmem>>, vector<8x128xf32>,
    %c0_126 = arith.constant 0 : index
    %c0_127 = arith.constant 0 : index
    %312 = vector.load %arg9[%c0_126, %c0_127] : memref<8x128xf32, #tpu.memory_space<vmem>>, vector<8x128xf32>
    tpu.vector_store %arg9[%c0_126, %c0_127], %293 {strides = array<i32>} : memref<8x128xf32, #tpu.memory_space<vmem>>, vector<8x128xf32>,
    %c0_128 = arith.constant 0 : index
    %c0_129 = arith.constant 0 : index
    %313 = vector.load %arg4[%c0_128, %c0_129] : memref<8x128xf32, #tpu.memory_space<vmem>>, vector<8x128xf32>
    tpu.vector_store %arg4[%c0_128, %c0_129], %309 {strides = array<i32>} : memref<8x128xf32, #tpu.memory_space<vmem>>, vector<8x128xf32>,
    return
  }
  func.func @transform_0(%arg0: i32, %arg1: i32) -> (i32, i32, i32) {
    %c0_i32 = arith.constant 0 : i32
    %c0_i32_0 = arith.constant 0 : i32
    return %arg1, %arg0, %c0_i32 : i32, i32, i32
  }
  func.func @transform_1(%arg0: i32, %arg1: i32) -> (i32, i32) {
    %c0_i32 = arith.constant 0 : i32
    %c0_i32_0 = arith.constant 0 : i32
    %c0_i32_1 = arith.constant 0 : i32
    return %c0_i32, %c0_i32_0 : i32, i32
  }
  func.func @transform_2(%arg0: i32, %arg1: i32) -> (i32, i32) {
    %c0_i32 = arith.constant 0 : i32
    %c0_i32_0 = arith.constant 0 : i32
    return %arg0, %c0_i32 : i32, i32
  }
  func.func @transform_3(%arg0: i32, %arg1: i32) -> (i32, i32, i32) {
    %c0_i32 = arith.constant 0 : i32
    %c0_i32_0 = arith.constant 0 : i32
    return %arg1, %arg0, %c0_i32 : i32, i32, i32
  }
}

</mosaic_0001>

<llo_original>
// kernel: snn_forward.1
$region0: #{snn_forward.1}
  #allocation0 [shape = 'u32[]', space=smem, size = 0x4, offset = 0x4, fixed_abs, tag = 'smem constant byte address 0x4 - core index']
  #allocation1 [shape = 'u32[72,128]{1,0:T(1,128)}', space=vmem, size = 0x9000, scoped, tag = 'internal scratch']
  #allocation2 [shape = 'f32[8,8,128]{2,1,0:T(8,128)}', space=vmem, size = 0x8000, scoped, tag = 'scratch operand']
  #allocation3 [shape = 'f32[8,128]{1,0:T(8,128)}', space=vmem, size = 0x1000, scoped, tag = 'scratch operand']
  #allocation4 [shape = 'f32[8,128]{1,0:T(8,128)}', space=vmem, size = 0x1000, scoped, tag = 'scratch operand']
  #allocation5 [shape = 'f32[8,128]{1,0:T(8,128)}', space=vmem, size = 0x1000, scoped, tag = 'scratch operand']
  %s0 = inlined_call_operand.hbm [shape: f32[8,16,128], index: 0, kind: input, shape index: {}]
  %s1 = inlined_call_operand.hbm [shape: f32[128,128], index: 1, kind: input, shape index: {}]
  %s2 = inlined_call_operand.vmem [shape: f32[16,128], index: 2, kind: output, shape index: {0}]
  %s3 = inlined_call_operand.hbm [shape: f32[8,16,128], index: 3, kind: output, shape index: {1}]
  %4 = xla_tuple %s2, %s3
  %s5 = sld [smem:[#allocation0]]
  $region61: #{snn_forward.1} parent=0
    _
  %s7 = ssub.s32 1, %s5
  %s8 = scalar_select 0, %s7, %s5
  $region1: #{snn_forward.1} parent=0
    #allocation6 [shape = 'u8[65536]{0}', space=vmem, size = 0x10000, scoped, tag = 'input window, operand 0']
    #allocation7 [shape = 's32[2]{0}', space=sflag, size = 0x8, scoped, tag = 'scoped memory for snn_forward.1']
    #allocation8 [shape = 's32[2]{0}', space=sflag, size = 0x8, scoped, tag = 'scoped memory for snn_forward.1']
    #allocation9 [shape = 'u8[65536]{0}', space=vmem, size = 0x10000, scoped, tag = 'input window, operand 1, single buffered']
    #allocation10 [shape = 's32[1]{0}', space=sflag, size = 0x4, scoped, tag = 'scoped memory for snn_forward.1']
    #allocation11 [shape = 'u8[65536]{0}', space=vmem, size = 0x10000, scoped, tag = 'output window, operand 1']
    %9 = vsyncpa [#allocation7], 0
    %s10 = scalar_lea.sflag [#allocation7], 1
    %11 = vsyncpa %s10, 0
    %12 = vsyncpa [#allocation10], 0
    %13 = vsyncpa [#allocation8], 0
    %s14 = scalar_lea.sflag [#allocation8], 1
    %15 = vsyncpa %s14, 0
    loop: start=0, step=1, limit=4
    $region2: #{snn_forward.1} parent=1 // loop_pre_header
      _
    $region3: #{snn_forward.1} parent=1 // loop_header
      %s17 = sphi 0, %s21
      %p18 = scmp.ge.s32.totalorder %s17, 4
      %s24 = sphi 0, %s36
      %s25 = sphi 0, %s32
      %s26 = sphi 0, %s24
      %s27 = sphi 0, %s25
      %s28 = sphi 0, %s26
      %s29 = sphi 0, %s27
      %s41 = sphi 0, %s43
      %s44 = sphi 0, %s41
      %s45 = sphi 0, %s44
      %s61 = sphi 0, %s45
      %s65 = sphi 0, %s65
      %s67 = sphi 0, %s65
      %s68 = sphi 0, %s67
      %s82 = sphi 0, %s68
      %s88 = sphi 0, %s90
      %s91 = sphi 0, %s88
      %s92 = sphi 0, %s91
      %s108 = sphi 0, %s92
      %s116 = sphi 0, %s118
      %s119 = sphi 0, %s116
      %s120 = sphi 0, %s119
      %s136 = sphi 0, %s120
    $region4: #{snn_forward.1} parent=1 // loop_header_branch
      %20 = sbr.rel (%p18) target = $region8
    $region5: #{snn_forward.1} parent=1 // loop_body
      %s22 = ssub.s32 %s17, 1
      %s23 = ssub.s32 %s17, 2
      %s30 = sadd.s32 1, %s25
      %p31 = scmp.ge.s32.totalorder %s30, 1
      %s32 = scalar_select %p31, 0, %s30
      %s33 = sadd.s32 1, %s24
      %s34 = scalar_select %p31, %s33, %s24
      %p35 = scmp.ge.s32.totalorder %s34, 2
      %s36 = scalar_select %p35, 0, %s34
      %s37 = ssub.s32 %s25, %s32
      %s38 = ssub.s32 %s24, %s36
      %s39 = sor.u32 %s37, %s38
      %p40 = scmp.eq.s32.totalorder %s39, 0
      %s42 = sadd.s32 %s41, 1
      %s43 = scalar_select %p40, %s41, %s42
      %p46 = pneg %p40
      %p47 = scmp.eq.s32.totalorder %s17, 1
      %p48 = por %p46, %p47
      %p49 = scmp.ne.s32.totalorder %s41, %s44
      %p50 = scmp.eq.s32.totalorder %s17, 0
      %p51 = por %p49, %p50
      %p52 = scmp.ne.s32.totalorder %s41, %s44
      %p53 = scmp.eq.s32.totalorder %s22, 1
      %p54 = por %p52, %p53
      %p55 = scmp.ne.s32.totalorder %s44, %s45
      %p56 = scmp.eq.s32.totalorder %s22, 0
      %p57 = por %p55, %p56
      %p58 = scmp.ne.s32.totalorder %s44, %s45
      %p59 = scmp.eq.s32.totalorder %s23, 1
      %p60 = por %p58, %p59
      %p62 = scmp.ne.s32.totalorder %s45, %s61
      %p63 = scmp.eq.s32.totalorder %s23, 0
      %p64 = por %p62, %p63
      %s66 = sadd.s32 %s65, 1
      %p69 = scmp.eq.s32.totalorder %s17, 1
      %p70 = scmp.ne.s32.totalorder %s65, %s67
      %p71 = scmp.eq.s32.totalorder %s17, 0
      %p72 = por %p70, %p71
      %p73 = scmp.ne.s32.totalorder %s65, %s67
      %p74 = scmp.eq.s32.totalorder %s22, 1
      %p75 = por %p73, %p74
      %p76 = scmp.ne.s32.totalorder %s67, %s68
      %p77 = scmp.eq.s32.totalorder %s22, 0
      %p78 = por %p76, %p77
      %p79 = scmp.ne.s32.totalorder %s67, %s68
      %p80 = scmp.eq.s32.totalorder %s23, 1
      %p81 = por %p79, %p80
      %p83 = scmp.ne.s32.totalorder %s68, %s82
      %p84 = scmp.eq.s32.totalorder %s23, 0
      %p85 = por %p83, %p84
      %s86 = ssub.s32 %s24, %s36
      %p87 = scmp.eq.s32.totalorder %s86, 0
      %s89 = sadd.s32 %s88, 1
      %s90 = scalar_select %p87, %s88, %s89
      %p93 = pneg %p87
      %p94 = scmp.eq.s32.totalorder %s17, 1
      %p95 = por %p93, %p94
      %p96 = scmp.ne.s32.totalorder %s88, %s91
      %p97 = scmp.eq.s32.totalorder %s17, 0
      %p98 = por %p96, %p97
      %p99 = scmp.ne.s32.totalorder %s88, %s91
      %p100 = scmp.eq.s32.totalorder %s22, 1
      %p101 = por %p99, %p100
      %p102 = scmp.ne.s32.totalorder %s91, %s92
      %p103 = scmp.eq.s32.totalorder %s22, 0
      %p104 = por %p102, %p103
      %p105 = scmp.ne.s32.totalorder %s91, %s92
      %p106 = scmp.eq.s32.totalorder %s23, 1
      %p107 = por %p105, %p106
      %p109 = scmp.ne.s32.totalorder %s92, %s108
      %p110 = scmp.eq.s32.totalorder %s23, 0
      %p111 = por %p109, %p110
      %s112 = ssub.s32 %s25, %s32
      %s113 = ssub.s32 %s24, %s36
      %s114 = sor.u32 %s112, %s113
      %p115 = scmp.eq.s32.totalorder %s114, 0
      %s117 = sadd.s32 %s116, 1
      %s118 = scalar_select %p115, %s116, %s117
      %p121 = pneg %p115
      %p122 = scmp.eq.s32.totalorder %s17, 1
      %p123 = por %p121, %p122
      %p124 = scmp.ne.s32.totalorder %s116, %s119
      %p125 = scmp.eq.s32.totalorder %s17, 0
      %p126 = por %p124, %p125
      %p127 = scmp.ne.s32.totalorder %s116, %s119
      %p128 = scmp.eq.s32.totalorder %s22, 1
      %p129 = por %p127, %p128
      %p130 = scmp.ne.s32.totalorder %s119, %s120
      %p131 = scmp.eq.s32.totalorder %s22, 0
      %p132 = por %p130, %p131
      %p133 = scmp.ne.s32.totalorder %s119, %s120
      %p134 = scmp.eq.s32.totalorder %s23, 1
      %p135 = por %p133, %p134
      %p137 = scmp.ne.s32.totalorder %s120, %s136
      %p138 = scmp.eq.s32.totalorder %s23, 0
      %p139 = por %p137, %p138
      %p140 = scmp.le.s32.totalorder 1, %s17
      %p141 = scmp.lt.s32.totalorder %s17, 3
      %p142 = pnand %p140, %p141
      %p143 = pneg %p142
      // Predicated region
      $region9: #{snn_forward.1} parent=5 // pred_check
        _
      $region10: #{snn_forward.1} parent=5 // pred_check_branch
        %145 = sbr.rel (%p142) target = $region12
      $region11: #{snn_forward.1} parent=5 // pred_region
        %s146 = ssub.s32 %s17, 1
        // Predicated region
        $region13: #{snn_forward.1} parent=11 // pred_check
          %p147 = pneg %p78
        $region14: #{snn_forward.1} parent=11 // pred_check_branch
          %149 = sbr.rel (%p147) target = $region16
        $region15: #{snn_forward.1} parent=11 // pred_region
          %151 = vsyncadd [#allocation10], 0
          %s152 = sshll.u32 %s1, 4
          %s153 = int_to_ptr.hbm [resolvable:$true] %s152
          %s154 = sshll.u32 [#allocation9], 4
          %s155 = int_to_ptr.vmem [resolvable:$true] %s154
          %160 = dma.hbm_to_vmem [thread:$0]  %s153, 2048, %s155, [#allocation10], 128, 128, 8
        $region16: #{snn_forward.1} parent=11 // pred_fallthru
          _
      $region12: #{snn_forward.1} parent=5 // pred_fallthru
        _
      %p161 = scmp.lt.s32.totalorder %s17, 2
      // Predicated region
      $region17: #{snn_forward.1} parent=5 // pred_check
        %p162 = pneg %p161
      $region18: #{snn_forward.1} parent=5 // pred_check_branch
        %164 = sbr.rel (%p162) target = $region20
      $region19: #{snn_forward.1} parent=5 // pred_region
        // Predicated region
        $region21: #{snn_forward.1} parent=19 // pred_check
          %p165 = pneg %p51
        $region22: #{snn_forward.1} parent=19 // pred_check_branch
          %167 = sbr.rel (%p165) target = $region24
        $region23: #{snn_forward.1} parent=19 // pred_region
          %s168 = sand.u32 %s41, 1
          %s169 = scalar_lea.sflag [#allocation7], %s168
          %s170 = sand.u32 %s41, 1
          %s171 = smul.addr %s170, 64
          %s172 = scalar_lea.vmem [#allocation6], %s171
          %s173 = smul.u32 8, %s25
          %175 = vsyncadd %s169, 0
          %s176 = smul.addr %s173, 2
          %s177 = sadd.s32 %s24, %s176
          %s178 = smul.addr %s177, 8
          %s179 = scalar_lea.hbm %s0, %s178
          %s180 = sshll.u32 %s179, 4
          %s181 = int_to_ptr.hbm [resolvable:$true] %s180
          %s182 = sshll.u32 %s172, 4
          %s183 = int_to_ptr.vmem [resolvable:$true] %s182
          %188 = dma.hbm_to_vmem [thread:$0]  %s181, 1024, %s183, %s169, 256, 128, 8
        $region24: #{snn_forward.1} parent=19 // pred_fallthru
          _
      $region20: #{snn_forward.1} parent=5 // pred_fallthru
        _
      %p189 = scmp.le.s32.totalorder 1, %s17
      %p190 = scmp.lt.s32.totalorder %s17, 3
      %p191 = pnand %p189, %p190
      %p192 = pneg %p191
      // Predicated region
      $region25: #{snn_forward.1} parent=5 // pred_check
        _
      $region26: #{snn_forward.1} parent=5 // pred_check_branch
        %194 = sbr.rel (%p191) target = $region28
      $region27: #{snn_forward.1} parent=5 // pred_region
        %s195 = ssub.s32 %s17, 1
        %s196 = sand.u32 %s44, 1
        %s197 = scalar_lea.sflag [#allocation7], %s196
        %s198 = sand.u32 %s44, 1
        %s199 = smul.addr %s198, 64
        %s200 = scalar_lea.vmem [#allocation6], %s199
        // Predicated region
        $region29: #{snn_forward.1} parent=27 // pred_check
          %p201 = pneg %p57
        $region30: #{snn_forward.1} parent=27 // pred_check_branch
          %203 = sbr.rel (%p201) target = $region32
        $region31: #{snn_forward.1} parent=27 // pred_region
          %205 = dma.done %s197, 1024
        $region32: #{snn_forward.1} parent=27 // pred_fallthru
          _
        // Predicated region
        $region33: #{snn_forward.1} parent=27 // pred_check
          %p206 = pneg %p78
        $region34: #{snn_forward.1} parent=27 // pred_check_branch
          %208 = sbr.rel (%p206) target = $region36
        $region35: #{snn_forward.1} parent=27 // pred_region
          %210 = dma.done [#allocation10], 2048
        $region36: #{snn_forward.1} parent=27 // pred_fallthru
          _
        %s211 = sand.u32 %s44, 1
        %s212 = scalar_lea.sflag [#allocation7], %s211
        %s213 = sand.u32 %s44, 1
        %s214 = smul.addr %s213, 64
        %s215 = scalar_lea.vmem [#allocation6], %s214
        %p216 = pneg %p57
        %p217 = pneg %p54
        %p218 = pneg %p78
        %p219 = pneg %p75
        %p220 = pneg %p104
        %p221 = pneg %p101
        %p222 = scmp.lt.s32.totalorder %s26, 1
        %s223 = scalar_select %p222, %s26, 1
        %s224 = smul.addr %s223, 8
        %s225 = scalar_lea.vmem %s2, %s224
        %p226 = pneg %p132
        %p227 = pneg %p129
        %s228 = sand.u32 %s119, 1
        %s229 = scalar_lea.sflag [#allocation8], %s228
        %s230 = sand.u32 %s119, 1
        %s231 = smul.addr %s230, 64
        %s232 = scalar_lea.vmem [#allocation11], %s231
        %s233 = smul.u32 8, %s27
        %p234 = scmp.lt.s32.totalorder %s26, 1
        %s235 = scalar_select %p234, %s26, 1
        %s236 = smul.addr %s235, 8
        %s237 = scalar_lea.vmem %s2, %s236
        %s238 = smul.u32 8, %s27
        %p239 = scmp.eq.s32.totalorder %s27, 0
        // Predicated region
        $region37: #{snn_forward.1} parent=27 // pred_check
          %p240 = pneg %p239
        $region38: #{snn_forward.1} parent=27 // pred_check_branch
          %242 = sbr.rel (%p240) target = $region40
        $region39: #{snn_forward.1} parent=27 // pred_region
          %243 = vst [vmem:[#allocation3] sm:$0xff] -65.0
          %244 = vst [vmem:[#allocation4] sm:$0xff] -50.0
          %245 = vst [vmem:[#allocation5] sm:$0xff] 0.0
          %246 = vst [vmem:[%s237] sm:$0xff] 0.0
        $region40: #{snn_forward.1} parent=27 // pred_fallthru
          _
        %v247 = vld [vmem:[%s200] sm:$0xff]
        %v248 = vld [vmem:[%s200 + $0x8] sm:$0xff]
        %v249 = vld [vmem:[%s200 + $0x10] sm:$0xff]
        %v250 = vld [vmem:[%s200 + $0x18] sm:$0xff]
        %v251 = vld [vmem:[%s200 + $0x20] sm:$0xff]
        %v252 = vld [vmem:[%s200 + $0x28] sm:$0xff]
        %v253 = vld [vmem:[%s200 + $0x30] sm:$0xff]
        %v254 = vld [vmem:[%s200 + $0x38] sm:$0xff]
        %v255 = vld [vmem:[#allocation9] sm:$0xff]
        %v256 = vld [vmem:[#allocation9 + $0x8] sm:$0xff]
        %v257 = vld [vmem:[#allocation9 + $0x10] sm:$0xff]
        %v258 = vld [vmem:[#allocation9 + $0x18] sm:$0xff]
        %v259 = vld [vmem:[#allocation9 + $0x20] sm:$0xff]
        %v260 = vld [vmem:[#allocation9 + $0x28] sm:$0xff]
        %v261 = vld [vmem:[#allocation9 + $0x30] sm:$0xff]
        %v262 = vld [vmem:[#allocation9 + $0x38] sm:$0xff]
        %v263 = vld [vmem:[#allocation9 + $0x40] sm:$0xff]
        %v264 = vld [vmem:[#allocation9 + $0x48] sm:$0xff]
        %v265 = vld [vmem:[#allocation9 + $0x50] sm:$0xff]
        %v266 = vld [vmem:[#allocation9 + $0x58] sm:$0xff]
        %v267 = vld [vmem:[#allocation9 + $0x60] sm:$0xff]
        %v268 = vld [vmem:[#allocation9 + $0x68] sm:$0xff]
        %v269 = vld [vmem:[#allocation9 + $0x70] sm:$0xff]
        %v270 = vld [vmem:[#allocation9 + $0x78] sm:$0xff]
        %271 = vmatpush.msra.mxu0 %v270
        %272 = vmatpush.msra.mxu0 %v269
        %273 = vmatpush.msra.mxu0 %v268
        %274 = vmatpush.msra.mxu0 %v267
        %275 = vmatpush.msra.mxu0 %v266
        %276 = vmatpush.msra.mxu0 %v265
        %277 = vmatpush.msra.mxu0 %v264
        %278 = vmatpush.msra.mxu0 %v263
        %279 = vmatpush.msra.mxu0 %v262
        %280 = vmatpush.msra.mxu0 %v261
        %281 = vmatpush.msra.mxu0 %v260
        %282 = vmatpush.msra.mxu0 %v259
        %283 = vmatpush.msra.mxu0 %v258
        %284 = vmatpush.msra.mxu0 %v257
        %285 = vmatpush.msra.mxu0 %v256
        %286 = vmatpush.msra.mxu0 %v255
        %287 = vmatmul.f32.gmra.mxu0 %v247
        %v288 = vpop.f32.mrf.mxu0
        %v289 = vadd.f32 0.0, %v288
        %290 = vmatmul.f32.gmra.mxu0 %v248
        %v291 = vpop.f32.mrf.mxu0
        %v292 = vadd.f32 0.0, %v291
        %293 = vmatmul.f32.gmra.mxu0 %v249
        %v294 = vpop.f32.mrf.mxu0
        %v295 = vadd.f32 0.0, %v294
        %296 = vmatmul.f32.gmra.mxu0 %v250
        %v297 = vpop.f32.mrf.mxu0
        %v298 = vadd.f32 0.0, %v297
        %299 = vmatmul.f32.gmra.mxu0 %v251
        %v300 = vpop.f32.mrf.mxu0
        %v301 = vadd.f32 0.0, %v300
        %302 = vmatmul.f32.gmra.mxu0 %v252
        %v303 = vpop.f32.mrf.mxu0
        %v304 = vadd.f32 0.0, %v303
        %305 = vmatmul.f32.gmra.mxu0 %v253
        %v306 = vpop.f32.mrf.mxu0
        %v307 = vadd.f32 0.0, %v306
        %308 = vmatmul.f32.gmra.mxu0 %v254
        %v309 = vpop.f32.mrf.mxu0
        %v310 = vadd.f32 0.0, %v309
        %311 = vdwg.mxu0
        %312 = vst [vmem:[#allocation2] sm:$0xff] %v289
        %313 = vst [vmem:[#allocation2 + $0x8] sm:$0xff] %v292
        %314 = vst [vmem:[#allocation2 + $0x10] sm:$0xff] %v295
        %315 = vst [vmem:[#allocation2 + $0x18] sm:$0xff] %v298
        %316 = vst [vmem:[#allocation2 + $0x20] sm:$0xff] %v301
        %317 = vst [vmem:[#allocation2 + $0x28] sm:$0xff] %v304
        %318 = vst [vmem:[#allocation2 + $0x30] sm:$0xff] %v307
        %319 = vst [vmem:[#allocation2 + $0x38] sm:$0xff] %v310
        %v320 = vld [vmem:[#allocation3] sm:$0xff]
        %v321 = vld [vmem:[#allocation4] sm:$0xff]
        %v322 = vld [vmem:[#allocation5] sm:$0xff]
        %v323 = vld [vmem:[%s237] sm:$0xff]
        %324 = vadd.xlane.f32.xlu0 %v322
        %v325 = vpop.xlane.xlu0 %324
        %v326 = vld [vmem:[#allocation2] sm:$0xff]
        %v327 = vsub.f32 %v322, %v325
        %v328 = vmul.f32 %v327, 0.5
        %v329 = vadd.f32 %v326, %v328
        %v330 = vsub.f32 -65.0, %v320
        %v331 = vmul.f32 %v330, 0.05
        %v332 = vadd.f32 %v320, %v331
        %v333 = vadd.f32 %v332, %v329
        %vm334 = vcmp.ge.f32.partialorder %v333, %v321
        %v335 = vsel %vm334, 1, 0
        %v336 = vcvt.s32.f32 %v335
        %v337 = vmul.f32 %v336, 5.0
        %v338 = vadd.f32 %v321, %v337
        %v339 = vsub.f32 %v321, -50.0
        %v340 = vmul.f32 %v339, 0.01
        %v341 = vsub.f32 %v338, %v340
        %vm342 = vcmp.gt.f32.partialorder %v336, 0.0
        %v343 = vsel %vm342, -65.0, %v333
        %344 = vst [vmem:[%s232] sm:$0xff] %v336
        %v345 = vadd.f32 %v323, %v336
        %346 = vadd.xlane.f32.xlu0 %v336
        %v347 = vpop.xlane.xlu0 %346
        %s348 = scalar_lea.vmem [#allocation2], 8
        %v349 = vld [vmem:[%s348] sm:$0xff]
        %v350 = vsub.f32 %v336, %v347
        %v351 = vmul.f32 %v350, 0.5
        %v352 = vadd.f32 %v349, %v351
        %v353 = vsub.f32 -65.0, %v343
        %v354 = vmul.f32 %v353, 0.05
        %v355 = vadd.f32 %v343, %v354
        %v356 = vadd.f32 %v355, %v352
        %vm357 = vcmp.ge.f32.partialorder %v356, %v341
        %v358 = vsel %vm357, 1, 0
        %v359 = vcvt.s32.f32 %v358
        %v360 = vmul.f32 %v359, 5.0
        %v361 = vadd.f32 %v341, %v360
        %v362 = vsub.f32 %v341, -50.0
        %v363 = vmul.f32 %v362, 0.01
        %v364 = vsub.f32 %v361, %v363
        %vm365 = vcmp.gt.f32.partialorder %v359, 0.0
        %v366 = vsel %vm365, -65.0, %v356
        %s367 = scalar_lea.vmem %s232, 8 [#allocation11]
        %368 = vst [vmem:[%s367] sm:$0xff] %v359
        %v369 = vadd.f32 %v345, %v359
        %370 = vadd.xlane.f32.xlu0 %v359
        %v371 = vpop.xlane.xlu0 %370
        %s372 = scalar_lea.vmem [#allocation2], 16
        %v373 = vld [vmem:[%s372] sm:$0xff]
        %v374 = vsub.f32 %v359, %v371
        %v375 = vmul.f32 %v374, 0.5
        %v376 = vadd.f32 %v373, %v375
        %v377 = vsub.f32 -65.0, %v366
        %v378 = vmul.f32 %v377, 0.05
        %v379 = vadd.f32 %v366, %v378
        %v380 = vadd.f32 %v379, %v376
        %vm381 = vcmp.ge.f32.partialorder %v380, %v364
        %v382 = vsel %vm381, 1, 0
        %v383 = vcvt.s32.f32 %v382
        %v384 = vmul.f32 %v383, 5.0
        %v385 = vadd.f32 %v364, %v384
        %v386 = vsub.f32 %v364, -50.0
        %v387 = vmul.f32 %v386, 0.01
        %v388 = vsub.f32 %v385, %v387
        %vm389 = vcmp.gt.f32.partialorder %v383, 0.0
        %v390 = vsel %vm389, -65.0, %v380
        %s391 = scalar_lea.vmem %s232, 16 [#allocation11]
        %392 = vst [vmem:[%s391] sm:$0xff] %v383
        %v393 = vadd.f32 %v369, %v383
        %394 = vadd.xlane.f32.xlu0 %v383
        %v395 = vpop.xlane.xlu0 %394
        %s396 = scalar_lea.vmem [#allocation2], 24
        %v397 = vld [vmem:[%s396] sm:$0xff]
        %v398 = vsub.f32 %v383, %v395
        %v399 = vmul.f32 %v398, 0.5
        %v400 = vadd.f32 %v397, %v399
        %v401 = vsub.f32 -65.0, %v390
        %v402 = vmul.f32 %v401, 0.05
        %v403 = vadd.f32 %v390, %v402
        %v404 = vadd.f32 %v403, %v400
        %vm405 = vcmp.ge.f32.partialorder %v404, %v388
        %v406 = vsel %vm405, 1, 0
        %v407 = vcvt.s32.f32 %v406
        %v408 = vmul.f32 %v407, 5.0
        %v409 = vadd.f32 %v388, %v408
        %v410 = vsub.f32 %v388, -50.0
        %v411 = vmul.f32 %v410, 0.01
        %v412 = vsub.f32 %v409, %v411
        %vm413 = vcmp.gt.f32.partialorder %v407, 0.0
        %v414 = vsel %vm413, -65.0, %v404
        %s415 = scalar_lea.vmem %s232, 24 [#allocation11]
        %416 = vst [vmem:[%s415] sm:$0xff] %v407
        %v417 = vadd.f32 %v393, %v407
        %418 = vadd.xlane.f32.xlu0 %v407
        %v419 = vpop.xlane.xlu0 %418
        %s420 = scalar_lea.vmem [#allocation2], 32
        %v421 = vld [vmem:[%s420] sm:$0xff]
        %v422 = vsub.f32 %v407, %v419
        %v423 = vmul.f32 %v422, 0.5
        %v424 = vadd.f32 %v421, %v423
        %v425 = vsub.f32 -65.0, %v414
        %v426 = vmul.f32 %v425, 0.05
        %v427 = vadd.f32 %v414, %v426
        %v428 = vadd.f32 %v427, %v424
        %vm429 = vcmp.ge.f32.partialorder %v428, %v412
        %v430 = vsel %vm429, 1, 0
        %v431 = vcvt.s32.f32 %v430
        %v432 = vmul.f32 %v431, 5.0
        %v433 = vadd.f32 %v412, %v432
        %v434 = vsub.f32 %v412, -50.0
        %v435 = vmul.f32 %v434, 0.01
        %v436 = vsub.f32 %v433, %v435
        %vm437 = vcmp.gt.f32.partialorder %v431, 0.0
        %v438 = vsel %vm437, -65.0, %v428
        %s439 = scalar_lea.vmem %s232, 32 [#allocation11]
        %440 = vst [vmem:[%s439] sm:$0xff] %v431
        %v441 = vadd.f32 %v417, %v431
        %442 = vadd.xlane.f32.xlu0 %v431
        %v443 = vpop.xlane.xlu0 %442
        %s444 = scalar_lea.vmem [#allocation2], 40
        %v445 = vld [vmem:[%s444] sm:$0xff]
        %v446 = vsub.f32 %v431, %v443
        %v447 = vmul.f32 %v446, 0.5
        %v448 = vadd.f32 %v445, %v447
        %v449 = vsub.f32 -65.0, %v438
        %v450 = vmul.f32 %v449, 0.05
        %v451 = vadd.f32 %v438, %v450
        %v452 = vadd.f32 %v451, %v448
        %vm453 = vcmp.ge.f32.partialorder %v452, %v436
        %v454 = vsel %vm453, 1, 0
        %v455 = vcvt.s32.f32 %v454
        %v456 = vmul.f32 %v455, 5.0
        %v457 = vadd.f32 %v436, %v456
        %v458 = vsub.f32 %v436, -50.0
        %v459 = vmul.f32 %v458, 0.01
        %v460 = vsub.f32 %v457, %v459
        %vm461 = vcmp.gt.f32.partialorder %v455, 0.0
        %v462 = vsel %vm461, -65.0, %v452
        %s463 = scalar_lea.vmem %s232, 40 [#allocation11]
        %464 = vst [vmem:[%s463] sm:$0xff] %v455
        %v465 = vadd.f32 %v441, %v455
        %466 = vadd.xlane.f32.xlu0 %v455
        %v467 = vpop.xlane.xlu0 %466
        %s468 = scalar_lea.vmem [#allocation2], 48
        %v469 = vld [vmem:[%s468] sm:$0xff]
        %v470 = vsub.f32 %v455, %v467
        %v471 = vmul.f32 %v470, 0.5
        %v472 = vadd.f32 %v469, %v471
        %v473 = vsub.f32 -65.0, %v462
        %v474 = vmul.f32 %v473, 0.05
        %v475 = vadd.f32 %v462, %v474
        %v476 = vadd.f32 %v475, %v472
        %vm477 = vcmp.ge.f32.partialorder %v476, %v460
        %v478 = vsel %vm477, 1, 0
        %v479 = vcvt.s32.f32 %v478
        %v480 = vmul.f32 %v479, 5.0
        %v481 = vadd.f32 %v460, %v480
        %v482 = vsub.f32 %v460, -50.0
        %v483 = vmul.f32 %v482, 0.01
        %v484 = vsub.f32 %v481, %v483
        %vm485 = vcmp.gt.f32.partialorder %v479, 0.0
        %v486 = vsel %vm485, -65.0, %v476
        %s487 = scalar_lea.vmem %s232, 48 [#allocation11]
        %488 = vst [vmem:[%s487] sm:$0xff] %v479
        %v489 = vadd.f32 %v465, %v479
        %490 = vadd.xlane.f32.xlu0 %v479
        %v491 = vpop.xlane.xlu0 %490
        %s492 = scalar_lea.vmem [#allocation2], 56
        %v493 = vld [vmem:[%s492] sm:$0xff]
        %v494 = vsub.f32 %v479, %v491
        %v495 = vmul.f32 %v494, 0.5
        %v496 = vadd.f32 %v493, %v495
        %v497 = vsub.f32 -65.0, %v486
        %v498 = vmul.f32 %v497, 0.05
        %v499 = vadd.f32 %v486, %v498
        %v500 = vadd.f32 %v499, %v496
        %vm501 = vcmp.ge.f32.partialorder %v500, %v484
        %v502 = vsel %vm501, 1, 0
        %v503 = vcvt.s32.f32 %v502
        %v504 = vmul.f32 %v503, 5.0
        %v505 = vadd.f32 %v484, %v504
        %v506 = vsub.f32 %v484, -50.0
        %v507 = vmul.f32 %v506, 0.01
        %v508 = vsub.f32 %v505, %v507
        %vm509 = vcmp.gt.f32.partialorder %v503, 0.0
        %v510 = vsel %vm509, -65.0, %v500
        %s511 = scalar_lea.vmem %s232, 56 [#allocation11]
        %512 = vst [vmem:[%s511] sm:$0xff] %v503
        %v513 = vadd.f32 %v489, %v503
        %514 = vst [vmem:[#allocation3] sm:$0xff] %v510
        %515 = vst [vmem:[#allocation4] sm:$0xff] %v508
        %516 = vst [vmem:[#allocation5] sm:$0xff] %v503
        %517 = vst [vmem:[%s237] sm:$0xff] %v513
        %p518 = scmp.lt.s32.totalorder %s26, 1
        %s519 = scalar_select %p518, %s26, 1
        %s520 = smul.addr %s519, 8
        %s521 = scalar_lea.vmem %s2, %s520
        %s522 = sand.u32 %s119, 1
        %s523 = scalar_lea.sflag [#allocation8], %s522
        %s524 = sand.u32 %s119, 1
        %s525 = smul.addr %s524, 64
        %s526 = scalar_lea.vmem [#allocation11], %s525
        // Predicated region
        $region41: #{snn_forward.1} parent=27 // pred_check
          %p527 = pneg %p101
        $region42: #{snn_forward.1} parent=27 // pred_check_branch
          %529 = sbr.rel (%p527) target = $region44
        $region43: #{snn_forward.1} parent=27 // pred_region
          _
        $region44: #{snn_forward.1} parent=27 // pred_fallthru
          _
        // Predicated region
        $region45: #{snn_forward.1} parent=27 // pred_check
          %p530 = pneg %p129
        $region46: #{snn_forward.1} parent=27 // pred_check_branch
          %532 = sbr.rel (%p530) target = $region48
        $region47: #{snn_forward.1} parent=27 // pred_region
          %s533 = smul.u32 8, %s27
          %535 = vsyncadd %s523, 0
          %s536 = smul.addr %s533, 2
          %s537 = sadd.s32 %s26, %s536
          %s538 = smul.addr %s537, 8
          %s539 = scalar_lea.hbm %s3, %s538
          %s540 = sshll.u32 %s526, 4
          %s541 = int_to_ptr.vmem [resolvable:$true] %s540
          %s542 = sshll.u32 %s539, 4
          %s543 = int_to_ptr.hbm [resolvable:$true] %s542
          %548 = dma.vmem_to_hbm [thread:$0]  %s541, 1024, %s543, %s523, 128, 256, 8
        $region48: #{snn_forward.1} parent=27 // pred_fallthru
          _
      $region28: #{snn_forward.1} parent=5 // pred_fallthru
        _
      %p549 = scmp.le.s32.totalorder 2, %s17
      // Predicated region
      $region49: #{snn_forward.1} parent=5 // pred_check
        %p550 = pneg %p549
      $region50: #{snn_forward.1} parent=5 // pred_check_branch
        %552 = sbr.rel (%p550) target = $region52
      $region51: #{snn_forward.1} parent=5 // pred_region
        %s553 = ssub.s32 %s17, 2
        // Predicated region
        $region53: #{snn_forward.1} parent=51 // pred_check
          %p554 = pneg %p107
        $region54: #{snn_forward.1} parent=51 // pred_check_branch
          %556 = sbr.rel (%p554) target = $region56
        $region55: #{snn_forward.1} parent=51 // pred_region
          %p557 = scmp.lt.s32.totalorder %s28, 1
          %s558 = scalar_select %p557, %s28, 1
          %s559 = smul.addr %s558, 8
          %s560 = scalar_lea.vmem %s2, %s559
        $region56: #{snn_forward.1} parent=51 // pred_fallthru
          _
        // Predicated region
        $region57: #{snn_forward.1} parent=51 // pred_check
          %p561 = pneg %p135
        $region58: #{snn_forward.1} parent=51 // pred_check_branch
          %563 = sbr.rel (%p561) target = $region60
        $region59: #{snn_forward.1} parent=51 // pred_region
          %s564 = sand.u32 %s120, 1
          %s565 = scalar_lea.sflag [#allocation8], %s564
          %s566 = sand.u32 %s120, 1
          %s567 = smul.addr %s566, 64
          %s568 = scalar_lea.vmem [#allocation11], %s567
          %570 = dma.done %s565, 1024
        $region60: #{snn_forward.1} parent=51 // pred_fallthru
          _
      $region52: #{snn_forward.1} parent=5 // pred_fallthru
        _
    $region6: #{snn_forward.1} parent=1 // loop_footer
      %s21 = sadd.s32 1, %s17
    $region7: #{snn_forward.1} parent=1 // loop_footer_branch
      %16 = sbr.rel target = $region3
    $region8: #{snn_forward.1} parent=1 // loop_exit
      _
    %571 = vsyncpa [#allocation7], 1
    %s572 = scalar_lea.sflag [#allocation7], 1
    %573 = vsyncpa %s572, 1
    %574 = vsyncpa [#allocation10], 1
    %575 = vsyncpa [#allocation8], 1
    %s576 = scalar_lea.sflag [#allocation8], 1
    %577 = vsyncpa %s576, 1

</llo_original>
